<compile_context>
chip_gen: v7x
topology: tpu7x:2x2x1
jax: 0.10.0
libtpu: 0.0.40
codegen_flags: <defaults>
</compile_context>

<pallas_src>
import jax
import jax.numpy as jnp
from jax.experimental import pallas as pl
from jax.experimental.pallas import tpu as pltpu

FT_DIM = 32
N_CLASSES = 14
DIMS = [FT_DIM, 512, 256, 256, 128, 64, N_CLASSES]
P_DROP = 0.2
DROP_WIDTHS = (256, 128, 64)   # after l3, l4, l5


def _round_up(n, m):
    return ((n + m - 1) // m) * m


def mlp_cla_kernel(x_ref,
                   w1, b1, w2, b2, w3, b3, w4, b4, w5, b5, w6, b6,
                   m3_ref, m4_ref, m5_ref,
                   o_ref):
    x = x_ref[...]
    h = jnp.maximum(jnp.dot(x, w1[...], preferred_element_type=jnp.float32) + b1[...], 0.0)
    h = jnp.maximum(jnp.dot(h, w2[...], preferred_element_type=jnp.float32) + b2[...], 0.0)
    h = jnp.maximum(jnp.dot(h, w3[...], preferred_element_type=jnp.float32) + b3[...], 0.0)
    h = h * m3_ref[...]                                   # dropout (pre-scaled mask)
    h = jnp.maximum(jnp.dot(h, w4[...], preferred_element_type=jnp.float32) + b4[...], 0.0)
    h = h * m4_ref[...]
    h = jnp.maximum(jnp.dot(h, w5[...], preferred_element_type=jnp.float32) + b5[...], 0.0)
    h = h * m5_ref[...]
    logits = jnp.dot(h, w6[...], preferred_element_type=jnp.float32) + b6[...]
    # log_softmax over the class (lane) dimension.
    m = jnp.max(logits, axis=-1, keepdims=True)
    shifted = logits - m
    lse = jnp.log(jnp.sum(jnp.exp(shifted), axis=-1, keepdims=True))
    o_ref[...] = shifted - lse


def _make_dropout_masks(key, batch, p):
    """Inverted-scaling keep masks (already scaled by 1/(1-p)), one per dropout layer."""
    keys = jax.random.split(key, len(DROP_WIDTHS))
    scale = 1.0 / (1.0 - p)
    masks = []
    for k, w in zip(keys, DROP_WIDTHS):
        keep = jax.random.bernoulli(k, 1.0 - p, (batch, w))
        masks.append(keep.astype(jnp.float32) * scale)
    return masks


def mlp_cla_forward(x, params, dropout_key, *, tile_b=512):
    B, ft = x.shape
    assert ft == FT_DIM

    # Batch tile: large (fills MXU rows / amortizes per-step overhead) but
    # clamped to the (8-rounded) batch for small inputs. Pad batch to a
    # multiple of the tile and slice the result afterwards.
    tb = min(tile_b, _round_up(B, 8))
    Bp = _round_up(B, tb)
    if Bp != B:
        x = jnp.pad(x, ((0, Bp - B), (0, 0)))

    masks = _make_dropout_masks(dropout_key, Bp, P_DROP)

    grid = (Bp // tb,)

    in_specs = [pl.BlockSpec((tb, FT_DIM), lambda i: (i, 0))]
    flat_args = [x]
    for (w, b) in params:
        wi, wo = w.shape
        in_specs.append(pl.BlockSpec((wi, wo), lambda i: (0, 0)))   # resident weights
        in_specs.append(pl.BlockSpec((1, wo), lambda i: (0, 0)))
        flat_args += [w, b]
    for m in masks:
        in_specs.append(pl.BlockSpec((tb, m.shape[1]), lambda i: (i, 0)))
        flat_args.append(m)

    out_spec = pl.BlockSpec((tb, N_CLASSES), lambda i: (i, 0))

    # Advisory cost estimate for XLA's scheduler.
    flops_per_row = 2 * sum(DIMS[i] * DIMS[i + 1] for i in range(6))
    bytes_w = sum(w.size + b.size for (w, b) in params) * 4
    bytes_io = (x.size + sum(m.size for m in masks) + Bp * N_CLASSES) * 4
    cost = pl.CostEstimate(
        flops=flops_per_row * Bp,
        transcendentals=Bp * (N_CLASSES + 1),
        bytes_accessed=bytes_w + bytes_io,
    )

    fn = pl.pallas_call(
        mlp_cla_kernel,
        out_shape=jax.ShapeDtypeStruct((Bp, N_CLASSES), jnp.float32),
        grid_spec=pltpu.PrefetchScalarGridSpec(
            num_scalar_prefetch=0,
            grid=grid,
            in_specs=in_specs,
            out_specs=out_spec,
        ),
        compiler_params=pltpu.CompilerParams(
            dimension_semantics=("parallel",),   # rows independent -> both v7x TCs
        ),
        cost_estimate=cost,
    )
    out = fn(*flat_args)
    return out[:B]


def init_params(key):
    """Deterministic init mimicking torch.nn.Linear (U(-1/sqrt(fan_in), 1/sqrt(fan_in)))."""
    params = []
    for i in range(6):
        fan_in, fan_out = DIMS[i], DIMS[i + 1]
        key, kw, kb = jax.random.split(key, 3)
        bound = 1.0 / (fan_in ** 0.5)
        w = jax.random.uniform(kw, (fan_in, fan_out), jnp.float32, -bound, bound)
        b = jax.random.uniform(kb, (1, fan_out), jnp.float32, -bound, bound)
        params.append((w, b))
    return params


if __name__ == "__main__":
    key = jax.random.PRNGKey(0)
    key, kx, kp, kd = jax.random.split(key, 4)

    B = 8
    x = jax.random.normal(kx, (B, FT_DIM), dtype=jnp.float32)
    params = init_params(kp)

    out = mlp_cla_forward(x, params, dropout_key=kd)
    jax.block_until_ready(out)

    assert out.shape == (B, N_CLASSES) and out.dtype == jnp.float32
    # log_softmax sanity: exp(out) sums to 1 per row.
    assert jnp.allclose(jnp.exp(out).sum(axis=-1), 1.0, atol=1e-4)
    print("KERNEL_OK")
</pallas_src>

<mosaic_0001>
module attributes {stable_mosaic.version = 11 : i64} {
  func.func @mlp_cla_kernel(%arg0: i32, %arg1: memref<8x32xf32, #tpu.memory_space<vmem>>, %arg2: memref<32x512xf32, #tpu.memory_space<vmem>>, %arg3: memref<1x512xf32, #tpu.memory_space<vmem>>, %arg4: memref<512x256xf32, #tpu.memory_space<vmem>>, %arg5: memref<1x256xf32, #tpu.memory_space<vmem>>, %arg6: memref<256x256xf32, #tpu.memory_space<vmem>>, %arg7: memref<1x256xf32, #tpu.memory_space<vmem>>, %arg8: memref<256x128xf32, #tpu.memory_space<vmem>>, %arg9: memref<1x128xf32, #tpu.memory_space<vmem>>, %arg10: memref<128x64xf32, #tpu.memory_space<vmem>>, %arg11: memref<1x64xf32, #tpu.memory_space<vmem>>, %arg12: memref<64x14xf32, #tpu.memory_space<vmem>>, %arg13: memref<1x14xf32, #tpu.memory_space<vmem>>, %arg14: memref<8x256xf32, #tpu.memory_space<vmem>>, %arg15: memref<8x128xf32, #tpu.memory_space<vmem>>, %arg16: memref<8x64xf32, #tpu.memory_space<vmem>>, %arg17: memref<8x14xf32, #tpu.memory_space<vmem>>) attributes {dimension_semantics = [#tpu.dimension_semantics<parallel>], iteration_bounds = array<i64: 1>, scalar_prefetch = 0 : i64, scratch_operands = 0 : i64, tpu.core_type = #tpu.core_type<tc>, window_params = [{transform_indices = @transform_0, window_bounds = array<i64: 8, 32>}, {pipeline_mode = #tpu.pipeline_mode<synchronous>, transform_indices = @transform_1, window_bounds = array<i64: 32, 512>}, {pipeline_mode = #tpu.pipeline_mode<synchronous>, transform_indices = @transform_2, window_bounds = array<i64: 1, 512>}, {pipeline_mode = #tpu.pipeline_mode<synchronous>, transform_indices = @transform_3, window_bounds = array<i64: 512, 256>}, {pipeline_mode = #tpu.pipeline_mode<synchronous>, transform_indices = @transform_4, window_bounds = array<i64: 1, 256>}, {pipeline_mode = #tpu.pipeline_mode<synchronous>, transform_indices = @transform_5, window_bounds = array<i64: 256, 256>}, {pipeline_mode = #tpu.pipeline_mode<synchronous>, transform_indices = @transform_6, window_bounds = array<i64: 1, 256>}, {pipeline_mode = #tpu.pipeline_mode<synchronous>, transform_indices = @transform_7, window_bounds = array<i64: 256, 128>}, {pipeline_mode = #tpu.pipeline_mode<synchronous>, transform_indices = @transform_8, window_bounds = array<i64: 1, 128>}, {pipeline_mode = #tpu.pipeline_mode<synchronous>, transform_indices = @transform_9, window_bounds = array<i64: 128, 64>}, {pipeline_mode = #tpu.pipeline_mode<synchronous>, transform_indices = @transform_10, window_bounds = array<i64: 1, 64>}, {pipeline_mode = #tpu.pipeline_mode<synchronous>, transform_indices = @transform_11, window_bounds = array<i64: 64, 14>}, {pipeline_mode = #tpu.pipeline_mode<synchronous>, transform_indices = @transform_12, window_bounds = array<i64: 1, 14>}, {transform_indices = @transform_13, window_bounds = array<i64: 8, 256>}, {transform_indices = @transform_14, window_bounds = array<i64: 8, 128>}, {transform_indices = @transform_15, window_bounds = array<i64: 8, 64>}, {transform_indices = @transform_16, window_bounds = array<i64: 8, 14>}]} {
    %c0 = arith.constant 0 : index
    %c0_0 = arith.constant 0 : index
    %0 = vector.load %arg1[%c0, %c0_0] : memref<8x32xf32, #tpu.memory_space<vmem>>, vector<8x32xf32>
    %c0_1 = arith.constant 0 : index
    %c0_2 = arith.constant 0 : index
    %1 = vector.load %arg2[%c0_1, %c0_2] : memref<32x512xf32, #tpu.memory_space<vmem>>, vector<32x512xf32>
    %cst = arith.constant dense<0.000000e+00> : vector<8x512xf32>
    %2 = tpu.matmul %0, %1, %cst {dimension_numbers = #tpu.dot_dimension_numbers<[1], [0], [0], [1], [0, 0, 1, 1], [], []>} : vector<8x32xf32>, vector<32x512xf32>, vector<8x512xf32> -> vector<8x512xf32>
    %c0_3 = arith.constant 0 : index
    %c0_4 = arith.constant 0 : index
    %3 = vector.load %arg3[%c0_3, %c0_4] : memref<1x512xf32, #tpu.memory_space<vmem>>, vector<1x512xf32>
    %4 = vector.broadcast %3 : vector<1x512xf32> to vector<8x512xf32>
    %5 = arith.addf %2, %4 : vector<8x512xf32>
    %cst_5 = arith.constant 0.000000e+00 : f32
    %6 = vector.broadcast %cst_5 : f32 to vector<8x512xf32>
    %7 = arith.maximumf %5, %6 : vector<8x512xf32>
    %c0_6 = arith.constant 0 : index
    %c0_7 = arith.constant 0 : index
    %8 = vector.load %arg4[%c0_6, %c0_7] : memref<512x256xf32, #tpu.memory_space<vmem>>, vector<512x256xf32>
    %cst_8 = arith.constant dense<0.000000e+00> : vector<8x256xf32>
    %9 = tpu.matmul %7, %8, %cst_8 {dimension_numbers = #tpu.dot_dimension_numbers<[1], [0], [0], [1], [0, 0, 1, 1], [], []>} : vector<8x512xf32>, vector<512x256xf32>, vector<8x256xf32> -> vector<8x256xf32>
    %c0_9 = arith.constant 0 : index
    %c0_10 = arith.constant 0 : index
    %10 = vector.load %arg5[%c0_9, %c0_10] : memref<1x256xf32, #tpu.memory_space<vmem>>, vector<1x256xf32>
    %11 = vector.broadcast %10 : vector<1x256xf32> to vector<8x256xf32>
    %12 = arith.addf %9, %11 : vector<8x256xf32>
    %cst_11 = arith.constant 0.000000e+00 : f32
    %13 = vector.broadcast %cst_11 : f32 to vector<8x256xf32>
    %14 = arith.maximumf %12, %13 : vector<8x256xf32>
    %c0_12 = arith.constant 0 : index
    %c0_13 = arith.constant 0 : index
    %15 = vector.load %arg6[%c0_12, %c0_13] : memref<256x256xf32, #tpu.memory_space<vmem>>, vector<256x256xf32>
    %cst_14 = arith.constant dense<0.000000e+00> : vector<8x256xf32>
    %16 = tpu.matmul %14, %15, %cst_14 {dimension_numbers = #tpu.dot_dimension_numbers<[1], [0], [0], [1], [0, 0, 1, 1], [], []>} : vector<8x256xf32>, vector<256x256xf32>, vector<8x256xf32> -> vector<8x256xf32>
    %c0_15 = arith.constant 0 : index
    %c0_16 = arith.constant 0 : index
    %17 = vector.load %arg7[%c0_15, %c0_16] : memref<1x256xf32, #tpu.memory_space<vmem>>, vector<1x256xf32>
    %18 = vector.broadcast %17 : vector<1x256xf32> to vector<8x256xf32>
    %19 = arith.addf %16, %18 : vector<8x256xf32>
    %cst_17 = arith.constant 0.000000e+00 : f32
    %20 = vector.broadcast %cst_17 : f32 to vector<8x256xf32>
    %21 = arith.maximumf %19, %20 : vector<8x256xf32>
    %c0_18 = arith.constant 0 : index
    %c0_19 = arith.constant 0 : index
    %22 = vector.load %arg14[%c0_18, %c0_19] : memref<8x256xf32, #tpu.memory_space<vmem>>, vector<8x256xf32>
    %23 = arith.mulf %21, %22 : vector<8x256xf32>
    %c0_20 = arith.constant 0 : index
    %c0_21 = arith.constant 0 : index
    %24 = vector.load %arg8[%c0_20, %c0_21] : memref<256x128xf32, #tpu.memory_space<vmem>>, vector<256x128xf32>
    %cst_22 = arith.constant dense<0.000000e+00> : vector<8x128xf32>
    %25 = tpu.matmul %23, %24, %cst_22 {dimension_numbers = #tpu.dot_dimension_numbers<[1], [0], [0], [1], [0, 0, 1, 1], [], []>} : vector<8x256xf32>, vector<256x128xf32>, vector<8x128xf32> -> vector<8x128xf32>
    %c0_23 = arith.constant 0 : index
    %c0_24 = arith.constant 0 : index
    %26 = vector.load %arg9[%c0_23, %c0_24] : memref<1x128xf32, #tpu.memory_space<vmem>>, vector<1x128xf32>
    %27 = vector.broadcast %26 : vector<1x128xf32> to vector<8x128xf32>
    %28 = arith.addf %25, %27 : vector<8x128xf32>
    %cst_25 = arith.constant 0.000000e+00 : f32
    %29 = vector.broadcast %cst_25 : f32 to vector<8x128xf32>
    %30 = arith.maximumf %28, %29 : vector<8x128xf32>
    %c0_26 = arith.constant 0 : index
    %c0_27 = arith.constant 0 : index
    %31 = vector.load %arg15[%c0_26, %c0_27] : memref<8x128xf32, #tpu.memory_space<vmem>>, vector<8x128xf32>
    %32 = arith.mulf %30, %31 : vector<8x128xf32>
    %c0_28 = arith.constant 0 : index
    %c0_29 = arith.constant 0 : index
    %33 = vector.load %arg10[%c0_28, %c0_29] : memref<128x64xf32, #tpu.memory_space<vmem>>, vector<128x64xf32>
    %cst_30 = arith.constant dense<0.000000e+00> : vector<8x64xf32>
    %34 = tpu.matmul %32, %33, %cst_30 {dimension_numbers = #tpu.dot_dimension_numbers<[1], [0], [0], [1], [0, 0, 1, 1], [], []>} : vector<8x128xf32>, vector<128x64xf32>, vector<8x64xf32> -> vector<8x64xf32>
    %c0_31 = arith.constant 0 : index
    %c0_32 = arith.constant 0 : index
    %35 = vector.load %arg11[%c0_31, %c0_32] : memref<1x64xf32, #tpu.memory_space<vmem>>, vector<1x64xf32>
    %36 = vector.broadcast %35 : vector<1x64xf32> to vector<8x64xf32>
    %37 = arith.addf %34, %36 : vector<8x64xf32>
    %cst_33 = arith.constant 0.000000e+00 : f32
    %38 = vector.broadcast %cst_33 : f32 to vector<8x64xf32>
    %39 = arith.maximumf %37, %38 : vector<8x64xf32>
    %c0_34 = arith.constant 0 : index
    %c0_35 = arith.constant 0 : index
    %40 = vector.load %arg16[%c0_34, %c0_35] : memref<8x64xf32, #tpu.memory_space<vmem>>, vector<8x64xf32>
    %41 = arith.mulf %39, %40 : vector<8x64xf32>
    %c0_36 = arith.constant 0 : index
    %c0_37 = arith.constant 0 : index
    %42 = vector.load %arg12[%c0_36, %c0_37] : memref<64x14xf32, #tpu.memory_space<vmem>>, vector<64x14xf32>
    %cst_38 = arith.constant dense<0.000000e+00> : vector<8x14xf32>
    %43 = tpu.matmul %41, %42, %cst_38 {dimension_numbers = #tpu.dot_dimension_numbers<[1], [0], [0], [1], [0, 0, 1, 1], [], []>} : vector<8x64xf32>, vector<64x14xf32>, vector<8x14xf32> -> vector<8x14xf32>
    %c0_39 = arith.constant 0 : index
    %c0_40 = arith.constant 0 : index
    %44 = vector.load %arg13[%c0_39, %c0_40] : memref<1x14xf32, #tpu.memory_space<vmem>>, vector<1x14xf32>
    %45 = vector.broadcast %44 : vector<1x14xf32> to vector<8x14xf32>
    %46 = arith.addf %43, %45 : vector<8x14xf32>
    %cst_41 = arith.constant dense<0xFF800000> : vector<8xf32>
    %47 = vector.multi_reduction <maximumf>, %46, %cst_41 [1] : vector<8x14xf32> to vector<8xf32>
    %48 = vector.shape_cast %47 : vector<8xf32> to vector<8x1xf32>
    %49 = vector.broadcast %48 : vector<8x1xf32> to vector<8x14xf32>
    %50 = arith.subf %46, %49 : vector<8x14xf32>
    %51 = math.exp %50 : vector<8x14xf32>
    %cst_42 = arith.constant dense<0.000000e+00> : vector<8xf32>
    %52 = vector.multi_reduction <add>, %51, %cst_42 [1] : vector<8x14xf32> to vector<8xf32>
    %53 = vector.shape_cast %52 : vector<8xf32> to vector<8x1xf32>
    %54 = math.log %53 : vector<8x1xf32>
    %55 = vector.broadcast %54 : vector<8x1xf32> to vector<8x14xf32>
    %56 = arith.subf %50, %55 : vector<8x14xf32>
    %c0_43 = arith.constant 0 : index
    %c0_44 = arith.constant 0 : index
    %57 = vector.load %arg17[%c0_43, %c0_44] : memref<8x14xf32, #tpu.memory_space<vmem>>, vector<8x14xf32>
    tpu.vector_store %arg17[%c0_43, %c0_44], %56 {strides = array<i32>} : memref<8x14xf32, #tpu.memory_space<vmem>>, vector<8x14xf32>,
    return
  }
  func.func @transform_0(%arg0: i32) -> (i32, i32) {
    %c0_i32 = arith.constant 0 : i32
    %c0_i32_0 = arith.constant 0 : i32
    return %arg0, %c0_i32 : i32, i32
  }
  func.func @transform_1(%arg0: i32) -> (i32, i32) {
    %c0_i32 = arith.constant 0 : i32
    %c0_i32_0 = arith.constant 0 : i32
    %c0_i32_1 = arith.constant 0 : i32
    return %c0_i32, %c0_i32_0 : i32, i32
  }
  func.func @transform_2(%arg0: i32) -> (i32, i32) {
    %c0_i32 = arith.constant 0 : i32
    %c0_i32_0 = arith.constant 0 : i32
    %c0_i32_1 = arith.constant 0 : i32
    return %c0_i32, %c0_i32_0 : i32, i32
  }
  func.func @transform_3(%arg0: i32) -> (i32, i32) {
    %c0_i32 = arith.constant 0 : i32
    %c0_i32_0 = arith.constant 0 : i32
    %c0_i32_1 = arith.constant 0 : i32
    return %c0_i32, %c0_i32_0 : i32, i32
  }
  func.func @transform_4(%arg0: i32) -> (i32, i32) {
    %c0_i32 = arith.constant 0 : i32
    %c0_i32_0 = arith.constant 0 : i32
    %c0_i32_1 = arith.constant 0 : i32
    return %c0_i32, %c0_i32_0 : i32, i32
  }
  func.func @transform_5(%arg0: i32) -> (i32, i32) {
    %c0_i32 = arith.constant 0 : i32
    %c0_i32_0 = arith.constant 0 : i32
    %c0_i32_1 = arith.constant 0 : i32
    return %c0_i32, %c0_i32_0 : i32, i32
  }
  func.func @transform_6(%arg0: i32) -> (i32, i32) {
    %c0_i32 = arith.constant 0 : i32
    %c0_i32_0 = arith.constant 0 : i32
    %c0_i32_1 = arith.constant 0 : i32
    return %c0_i32, %c0_i32_0 : i32, i32
  }
  func.func @transform_7(%arg0: i32) -> (i32, i32) {
    %c0_i32 = arith.constant 0 : i32
    %c0_i32_0 = arith.constant 0 : i32
    %c0_i32_1 = arith.constant 0 : i32
    return %c0_i32, %c0_i32_0 : i32, i32
  }
  func.func @transform_8(%arg0: i32) -> (i32, i32) {
    %c0_i32 = arith.constant 0 : i32
    %c0_i32_0 = arith.constant 0 : i32
    %c0_i32_1 = arith.constant 0 : i32
    return %c0_i32, %c0_i32_0 : i32, i32
  }
  func.func @transform_9(%arg0: i32) -> (i32, i32) {
    %c0_i32 = arith.constant 0 : i32
    %c0_i32_0 = arith.constant 0 : i32
    %c0_i32_1 = arith.constant 0 : i32
    return %c0_i32, %c0_i32_0 : i32, i32
  }
  func.func @transform_10(%arg0: i32) -> (i32, i32) {
    %c0_i32 = arith.constant 0 : i32
    %c0_i32_0 = arith.constant 0 : i32
    %c0_i32_1 = arith.constant 0 : i32
    return %c0_i32, %c0_i32_0 : i32, i32
  }
  func.func @transform_11(%arg0: i32) -> (i32, i32) {
    %c0_i32 = arith.constant 0 : i32
    %c0_i32_0 = arith.constant 0 : i32
    %c0_i32_1 = arith.constant 0 : i32
    return %c0_i32, %c0_i32_0 : i32, i32
  }
  func.func @transform_12(%arg0: i32) -> (i32, i32) {
    %c0_i32 = arith.constant 0 : i32
    %c0_i32_0 = arith.constant 0 : i32
    %c0_i32_1 = arith.constant 0 : i32
    return %c0_i32, %c0_i32_0 : i32, i32
  }
  func.func @transform_13(%arg0: i32) -> (i32, i32) {
    %c0_i32 = arith.constant 0 : i32
    %c0_i32_0 = arith.constant 0 : i32
    return %arg0, %c0_i32 : i32, i32
  }
  func.func @transform_14(%arg0: i32) -> (i32, i32) {
    %c0_i32 = arith.constant 0 : i32
    %c0_i32_0 = arith.constant 0 : i32
    return %arg0, %c0_i32 : i32, i32
  }
  func.func @transform_15(%arg0: i32) -> (i32, i32) {
    %c0_i32 = arith.constant 0 : i32
    %c0_i32_0 = arith.constant 0 : i32
    return %arg0, %c0_i32 : i32, i32
  }
  func.func @transform_16(%arg0: i32) -> (i32, i32) {
    %c0_i32 = arith.constant 0 : i32
    %c0_i32_0 = arith.constant 0 : i32
    return %arg0, %c0_i32 : i32, i32
  }
}

</mosaic_0001>

<llo_original>
// kernel: tpu_custom_call.1
$region0: #{tpu_custom_call.1}
  #allocation0 [shape = 'u32[]', space=smem, size = 0x4, offset = 0x4, fixed_abs, tag = 'smem constant byte address 0x4 - core index']
  #allocation1 [shape = 'u32[144,128]{1,0:T(1,128)}', space=vmem, size = 0x12000, scoped, tag = 'internal scratch']
  %s0 = inlined_call_operand.vmem [shape: f32[8,32], index: 0, kind: input, shape index: {}]
  %s1 = inlined_call_operand.hbm [shape: f32[32,512], index: 1, kind: input, shape index: {}]
  %s2 = inlined_call_operand.hbm [shape: f32[1,512], index: 2, kind: input, shape index: {}]
  %s3 = inlined_call_operand.hbm [shape: f32[512,256], index: 3, kind: input, shape index: {}]
  %s4 = inlined_call_operand.hbm [shape: f32[1,256], index: 4, kind: input, shape index: {}]
  %s5 = inlined_call_operand.hbm [shape: f32[256,256], index: 5, kind: input, shape index: {}]
  %s6 = inlined_call_operand.hbm [shape: f32[1,256], index: 6, kind: input, shape index: {}]
  %s7 = inlined_call_operand.vmem [shape: f32[256,128], index: 7, kind: input, shape index: {}]
  %s8 = inlined_call_operand.vmem [shape: f32[1,128], index: 8, kind: input, shape index: {}]
  %s9 = inlined_call_operand.vmem [shape: f32[128,64], index: 9, kind: input, shape index: {}]
  %s10 = inlined_call_operand.hbm [shape: f32[1,64], index: 10, kind: input, shape index: {}]
  %s11 = inlined_call_operand.vmem [shape: f32[64,14], index: 11, kind: input, shape index: {}]
  %s12 = inlined_call_operand.vmem [shape: f32[1,14], index: 12, kind: input, shape index: {}]
  %s13 = inlined_call_operand.vmem [shape: f32[8,256], index: 13, kind: input, shape index: {}]
  %s14 = inlined_call_operand.vmem [shape: f32[8,128], index: 14, kind: input, shape index: {}]
  %s15 = inlined_call_operand.vmem [shape: f32[8,64], index: 15, kind: input, shape index: {}]
  %s16 = inlined_call_operand.hbm [shape: f32[8,14], index: 16, kind: output, shape index: {}]
  %s17 = sld [smem:[#allocation0]]
  $region102: #{tpu_custom_call.1} parent=0
    _
  %s19 = ssub.s32 1, %s17
  %s20 = scalar_select 0, %s19, %s17
  $region1: #{tpu_custom_call.1} parent=0
    #allocation2 [shape = 'u8[65536]{0}', space=vmem, size = 0x10000, scoped, tag = 'input window, operand 1, single buffered']
    #allocation3 [shape = 's32[1]{0}', space=sflag, size = 0x4, scoped, tag = 'scoped memory for tpu_custom_call.1']
    #allocation4 [shape = 's32[1]{0}', space=sflag, size = 0x4, scoped, tag = 'scoped memory for tpu_custom_call.1']
    #allocation5 [shape = 'u8[2048]{0}', space=vmem, size = 0x800, scoped, tag = 'input window, operand 2, single buffered']
    #allocation6 [shape = 's32[1]{0}', space=sflag, size = 0x4, scoped, tag = 'scoped memory for tpu_custom_call.1']
    #allocation7 [shape = 'u8[524288]{0}', space=vmem, size = 0x80000, scoped, tag = 'input window, operand 3, single buffered']
    #allocation8 [shape = 'u8[1024]{0}', space=vmem, size = 0x400, scoped, tag = 'input window, operand 4, single buffered']
    #allocation9 [shape = 's32[1]{0}', space=sflag, size = 0x4, scoped, tag = 'scoped memory for tpu_custom_call.1']
    #allocation10 [shape = 'u8[262144]{0}', space=vmem, size = 0x40000, scoped, tag = 'input window, operand 5, single buffered']
    #allocation11 [shape = 'u8[1024]{0}', space=vmem, size = 0x400, scoped, tag = 'input window, operand 6, single buffered']
    #allocation12 [shape = 's32[1]{0}', space=sflag, size = 0x4, scoped, tag = 'scoped memory for tpu_custom_call.1']
    #allocation13 [shape = 'u8[512]{0}', space=vmem, size = 0x400, scoped, tag = 'input window, operand 10, single buffered']
    #allocation14 [shape = 'u8[4096]{0}', space=vmem, size = 0x1000, scoped, tag = 'output window, operand 0, single buffered']
    %21 = vsyncpa [#allocation3], 0
    %22 = vsyncpa [#allocation6], 0
    %23 = vsyncpa [#allocation9], 0
    %24 = vsyncpa [#allocation12], 0
    %25 = vsyncpa [#allocation4], 0
    // Predicated region
    $region2: #{tpu_custom_call.1} parent=1 // pred_check
      _
    $region3: #{tpu_custom_call.1} parent=1 // pred_check_branch
      %27 = sbr.rel (0) target = $region5
    $region4: #{tpu_custom_call.1} parent=1 // pred_region
      _
    $region5: #{tpu_custom_call.1} parent=1 // pred_fallthru
      _
    // Predicated region
    $region6: #{tpu_custom_call.1} parent=1 // pred_check
      _
    $region7: #{tpu_custom_call.1} parent=1 // pred_check_branch
      %29 = sbr.rel (0) target = $region9
    $region8: #{tpu_custom_call.1} parent=1 // pred_region
      %s31 = ssub.s32 2048, 2048
      %32 = vsyncadd [#allocation3], %s31
      %s33 = sshll.u32 [#allocation2], 4
      %s34 = int_to_ptr.vmem [resolvable:$true] %s33
      %39 = dma.hbm_to_vmem [thread:$0]  %s1, 2048, %s34, [#allocation3], 512, 512, 32
    $region9: #{tpu_custom_call.1} parent=1 // pred_fallthru
      _
    // Predicated region
    $region10: #{tpu_custom_call.1} parent=1 // pred_check
      _
    $region11: #{tpu_custom_call.1} parent=1 // pred_check_branch
      %41 = sbr.rel (0) target = $region13
    $region12: #{tpu_custom_call.1} parent=1 // pred_region
      %s43 = ssub.s32 64, 64
      %44 = vsyncadd [#allocation6], %s43
      %s46 = sshll.u32 [#allocation5], 4
      %s47 = int_to_ptr.vmem [resolvable:$true] %s46
      %49 = dma.hbm_to_vmem [thread:$0]  %s2, 64, %s47, [#allocation6]
    $region13: #{tpu_custom_call.1} parent=1 // pred_fallthru
      _
    // Predicated region
    $region14: #{tpu_custom_call.1} parent=1 // pred_check
      _
    $region15: #{tpu_custom_call.1} parent=1 // pred_check_branch
      %51 = sbr.rel (0) target = $region17
    $region16: #{tpu_custom_call.1} parent=1 // pred_region
      %s53 = ssub.s32 16384, 16384
      %54 = vsyncadd [#allocation6], %s53
      %s55 = sshll.u32 [#allocation7], 4
      %s56 = int_to_ptr.vmem [resolvable:$true] %s55
      %61 = dma.hbm_to_vmem [thread:$0]  %s3, 16384, %s56, [#allocation6], 256, 256, 16
    $region17: #{tpu_custom_call.1} parent=1 // pred_fallthru
      _
    // Predicated region
    $region18: #{tpu_custom_call.1} parent=1 // pred_check
      _
    $region19: #{tpu_custom_call.1} parent=1 // pred_check_branch
      %63 = sbr.rel (0) target = $region21
    $region20: #{tpu_custom_call.1} parent=1 // pred_region
      %s65 = ssub.s32 32, 32
      %66 = vsyncadd [#allocation9], %s65
      %s68 = sshll.u32 [#allocation8], 4
      %s69 = int_to_ptr.vmem [resolvable:$true] %s68
      %71 = dma.hbm_to_vmem [thread:$0]  %s4, 32, %s69, [#allocation9]
    $region21: #{tpu_custom_call.1} parent=1 // pred_fallthru
      _
    // Predicated region
    $region22: #{tpu_custom_call.1} parent=1 // pred_check
      _
    $region23: #{tpu_custom_call.1} parent=1 // pred_check_branch
      %73 = sbr.rel (0) target = $region25
    $region24: #{tpu_custom_call.1} parent=1 // pred_region
      %s75 = ssub.s32 8192, 8192
      %76 = vsyncadd [#allocation9], %s75
      %s77 = sshll.u32 [#allocation10], 4
      %s78 = int_to_ptr.vmem [resolvable:$true] %s77
      %83 = dma.hbm_to_vmem [thread:$0]  %s5, 8192, %s78, [#allocation9], 256, 256, 16
    $region25: #{tpu_custom_call.1} parent=1 // pred_fallthru
      _
    // Predicated region
    $region26: #{tpu_custom_call.1} parent=1 // pred_check
      _
    $region27: #{tpu_custom_call.1} parent=1 // pred_check_branch
      %85 = sbr.rel (0) target = $region29
    $region28: #{tpu_custom_call.1} parent=1 // pred_region
      %s87 = ssub.s32 32, 32
      %88 = vsyncadd [#allocation12], %s87
      %s90 = sshll.u32 [#allocation11], 4
      %s91 = int_to_ptr.vmem [resolvable:$true] %s90
      %93 = dma.hbm_to_vmem [thread:$0]  %s6, 32, %s91, [#allocation12]
    $region29: #{tpu_custom_call.1} parent=1 // pred_fallthru
      _
    // Predicated region
    $region30: #{tpu_custom_call.1} parent=1 // pred_check
      _
    $region31: #{tpu_custom_call.1} parent=1 // pred_check_branch
      %95 = sbr.rel (0) target = $region33
    $region32: #{tpu_custom_call.1} parent=1 // pred_region
      _
    $region33: #{tpu_custom_call.1} parent=1 // pred_fallthru
      _
    // Predicated region
    $region34: #{tpu_custom_call.1} parent=1 // pred_check
      _
    $region35: #{tpu_custom_call.1} parent=1 // pred_check_branch
      %97 = sbr.rel (0) target = $region37
    $region36: #{tpu_custom_call.1} parent=1 // pred_region
      _
    $region37: #{tpu_custom_call.1} parent=1 // pred_fallthru
      _
    // Predicated region
    $region38: #{tpu_custom_call.1} parent=1 // pred_check
      _
    $region39: #{tpu_custom_call.1} parent=1 // pred_check_branch
      %99 = sbr.rel (0) target = $region41
    $region40: #{tpu_custom_call.1} parent=1 // pred_region
      _
    $region41: #{tpu_custom_call.1} parent=1 // pred_fallthru
      _
    // Predicated region
    $region42: #{tpu_custom_call.1} parent=1 // pred_check
      _
    $region43: #{tpu_custom_call.1} parent=1 // pred_check_branch
      %101 = sbr.rel (0) target = $region45
    $region44: #{tpu_custom_call.1} parent=1 // pred_region
      %s103 = ssub.s32 16, 16
      %104 = vsyncadd [#allocation12], %s103
      %s106 = sshll.u32 [#allocation13], 4
      %s107 = int_to_ptr.vmem [resolvable:$true] %s106
      %109 = dma.hbm_to_vmem [thread:$0]  %s10, 16, %s107, [#allocation12]
    $region45: #{tpu_custom_call.1} parent=1 // pred_fallthru
      _
    // Predicated region
    $region46: #{tpu_custom_call.1} parent=1 // pred_check
      _
    $region47: #{tpu_custom_call.1} parent=1 // pred_check_branch
      %111 = sbr.rel (0) target = $region49
    $region48: #{tpu_custom_call.1} parent=1 // pred_region
      _
    $region49: #{tpu_custom_call.1} parent=1 // pred_fallthru
      _
    // Predicated region
    $region50: #{tpu_custom_call.1} parent=1 // pred_check
      _
    $region51: #{tpu_custom_call.1} parent=1 // pred_check_branch
      %113 = sbr.rel (0) target = $region53
    $region52: #{tpu_custom_call.1} parent=1 // pred_region
      _
    $region53: #{tpu_custom_call.1} parent=1 // pred_fallthru
      _
    // Predicated region
    $region54: #{tpu_custom_call.1} parent=1 // pred_check
      _
    $region55: #{tpu_custom_call.1} parent=1 // pred_check_branch
      %115 = sbr.rel (0) target = $region57
    $region56: #{tpu_custom_call.1} parent=1 // pred_region
      _
    $region57: #{tpu_custom_call.1} parent=1 // pred_fallthru
      _
    // Predicated region
    $region58: #{tpu_custom_call.1} parent=1 // pred_check
      _
    $region59: #{tpu_custom_call.1} parent=1 // pred_check_branch
      %117 = sbr.rel (0) target = $region61
    $region60: #{tpu_custom_call.1} parent=1 // pred_region
      _
    $region61: #{tpu_custom_call.1} parent=1 // pred_fallthru
      _
    // Predicated region
    $region62: #{tpu_custom_call.1} parent=1 // pred_check
      _
    $region63: #{tpu_custom_call.1} parent=1 // pred_check_branch
      %119 = sbr.rel (0) target = $region65
    $region64: #{tpu_custom_call.1} parent=1 // pred_region
      _
    $region65: #{tpu_custom_call.1} parent=1 // pred_fallthru
      _
    // Predicated region
    $region66: #{tpu_custom_call.1} parent=1 // pred_check
      _
    $region67: #{tpu_custom_call.1} parent=1 // pred_check_branch
      %121 = sbr.rel (0) target = $region69
    $region68: #{tpu_custom_call.1} parent=1 // pred_region
      %122 = dma.done [#allocation3], 2048
    $region69: #{tpu_custom_call.1} parent=1 // pred_fallthru
      _
    // Predicated region
    $region70: #{tpu_custom_call.1} parent=1 // pred_check
      _
    $region71: #{tpu_custom_call.1} parent=1 // pred_check_branch
      %124 = sbr.rel (0) target = $region73
    $region72: #{tpu_custom_call.1} parent=1 // pred_region
      %125 = dma.done [#allocation6], 64
    $region73: #{tpu_custom_call.1} parent=1 // pred_fallthru
      _
    // Predicated region
    $region74: #{tpu_custom_call.1} parent=1 // pred_check
      _
    $region75: #{tpu_custom_call.1} parent=1 // pred_check_branch
      %127 = sbr.rel (0) target = $region77
    $region76: #{tpu_custom_call.1} parent=1 // pred_region
      %128 = dma.done [#allocation6], 16384
    $region77: #{tpu_custom_call.1} parent=1 // pred_fallthru
      _
    // Predicated region
    $region78: #{tpu_custom_call.1} parent=1 // pred_check
      _
    $region79: #{tpu_custom_call.1} parent=1 // pred_check_branch
      %130 = sbr.rel (0) target = $region81
    $region80: #{tpu_custom_call.1} parent=1 // pred_region
      %131 = dma.done [#allocation9], 32
    $region81: #{tpu_custom_call.1} parent=1 // pred_fallthru
      _
    // Predicated region
    $region82: #{tpu_custom_call.1} parent=1 // pred_check
      _
    $region83: #{tpu_custom_call.1} parent=1 // pred_check_branch
      %133 = sbr.rel (0) target = $region85
    $region84: #{tpu_custom_call.1} parent=1 // pred_region
      %134 = dma.done [#allocation9], 8192
    $region85: #{tpu_custom_call.1} parent=1 // pred_fallthru
      _
    // Predicated region
    $region86: #{tpu_custom_call.1} parent=1 // pred_check
      _
    $region87: #{tpu_custom_call.1} parent=1 // pred_check_branch
      %136 = sbr.rel (0) target = $region89
    $region88: #{tpu_custom_call.1} parent=1 // pred_region
      %137 = dma.done [#allocation12], 32
    $region89: #{tpu_custom_call.1} parent=1 // pred_fallthru
      _
    // Predicated region
    $region90: #{tpu_custom_call.1} parent=1 // pred_check
      _
    $region91: #{tpu_custom_call.1} parent=1 // pred_check_branch
      %139 = sbr.rel (0) target = $region93
    $region92: #{tpu_custom_call.1} parent=1 // pred_region
      %140 = dma.done [#allocation12], 16
    $region93: #{tpu_custom_call.1} parent=1 // pred_fallthru
      _
    %v141 = vld [vmem:[%s0] sm:$0xff]
    %v142 = vld [vmem:[#allocation2] sm:$0xff]
    %v143 = vld [vmem:[#allocation2 + $0x8] sm:$0xff]
    %v144 = vld [vmem:[#allocation2 + $0x10] sm:$0xff]
    %v145 = vld [vmem:[#allocation2 + $0x18] sm:$0xff]
    %v146 = vld [vmem:[#allocation2 + $0x20] sm:$0xff]
    %v147 = vld [vmem:[#allocation2 + $0x28] sm:$0xff]
    %v148 = vld [vmem:[#allocation2 + $0x30] sm:$0xff]
    %v149 = vld [vmem:[#allocation2 + $0x38] sm:$0xff]
    %v150 = vld [vmem:[#allocation2 + $0x40] sm:$0xff]
    %v151 = vld [vmem:[#allocation2 + $0x48] sm:$0xff]
    %v152 = vld [vmem:[#allocation2 + $0x50] sm:$0xff]
    %v153 = vld [vmem:[#allocation2 + $0x58] sm:$0xff]
    %v154 = vld [vmem:[#allocation2 + $0x60] sm:$0xff]
    %v155 = vld [vmem:[#allocation2 + $0x68] sm:$0xff]
    %v156 = vld [vmem:[#allocation2 + $0x70] sm:$0xff]
    %v157 = vld [vmem:[#allocation2 + $0x78] sm:$0xff]
    %v158 = vld [vmem:[#allocation5] sm:$0xf]
    %v160 = vlaneseq
    %v161 = vshrl.u32 %v160, 7
    %v162 = vsub.s32 0, %v161
    %v163 = vrot.slane %v158, %v162
    %v164 = vlaneseq
    %v165 = vshrl.u32 %v164, 7
    %v166 = vsub.s32 1, %v165
    %v167 = vrot.slane %v158, %v166
    %v168 = vlaneseq
    %v169 = vshrl.u32 %v168, 7
    %v170 = vsub.s32 2, %v169
    %v171 = vrot.slane %v158, %v170
    %v172 = vlaneseq
    %v173 = vshrl.u32 %v172, 7
    %v174 = vsub.s32 3, %v173
    %v175 = vrot.slane %v158, %v174
    %vm180 = vcmask 261120
    %v182 = vsel %vm180, %v141, 0
    %184 = vmatprep.subr.mxu0 %v143
    %185 = vmatpush1.msra.mxu0 %v142
    %186 = vmatprep.subr.mxu0 %v147
    %187 = vmatpush1.msra.mxu0 %v146
    %188 = vmatprep.subr.mxu0 %v151
    %189 = vmatpush1.msra.mxu0 %v150
    %190 = vmatprep.subr.mxu0 %v155
    %191 = vmatpush1.msra.mxu0 %v154
    %192 = vmatprep.subr.mxu0 0.0
    %193 = vmatpush1.msra.mxu0 0.0
    %194 = vmatprep.subr.mxu0 0.0
    %195 = vmatpush1.msra.mxu0 0.0
    %196 = vmatprep.subr.mxu0 0.0
    %197 = vmatpush1.msra.mxu0 0.0
    %198 = vmatprep.subr.mxu0 0.0
    %199 = vmatpush1.msra.mxu0 0.0
    %200 = vmatprep.subr.mxu0 0.0
    %201 = vmatpush1.msra.mxu0 0.0
    %202 = vmatprep.subr.mxu0 0.0
    %203 = vmatpush1.msra.mxu0 0.0
    %204 = vmatprep.subr.mxu0 0.0
    %205 = vmatpush1.msra.mxu0 0.0
    %206 = vmatprep.subr.mxu0 0.0
    %207 = vmatpush1.msra.mxu0 0.0
    %208 = vmatprep.subr.mxu0 0.0
    %209 = vmatpush1.msra.mxu0 0.0
    %210 = vmatprep.subr.mxu0 0.0
    %211 = vmatpush1.msra.mxu0 0.0
    %212 = vmatprep.subr.mxu0 0.0
    %213 = vmatpush1.msra.mxu0 0.0
    %214 = vmatprep.subr.mxu0 0.0
    %215 = vmatpush1.msra.mxu0 0.0
    %216 = vmatprep.subr.mxu0 0.0
    %217 = vmatpush1.msra.mxu0 0.0
    %218 = vmatprep.subr.mxu0 0.0
    %219 = vmatpush1.msra.mxu0 0.0
    %220 = vmatprep.subr.mxu0 0.0
    %221 = vmatpush1.msra.mxu0 0.0
    %222 = vmatprep.subr.mxu0 0.0
    %223 = vmatpush1.msra.mxu0 0.0
    %224 = vmatprep.subr.mxu0 0.0
    %225 = vmatpush1.msra.mxu0 0.0
    %226 = vmatprep.subr.mxu0 0.0
    %227 = vmatpush1.msra.mxu0 0.0
    %228 = vmatprep.subr.mxu0 0.0
    %229 = vmatpush1.msra.mxu0 0.0
    %230 = vmatprep.subr.mxu0 0.0
    %231 = vmatpush1.msra.mxu0 0.0
    %232 = vmatprep.subr.mxu0 0.0
    %233 = vmatpush1.msra.mxu0 0.0
    %234 = vmatprep.subr.mxu0 0.0
    %235 = vmatpush1.msra.mxu0 0.0
    %236 = vmatprep.subr.mxu0 0.0
    %237 = vmatpush1.msra.mxu0 0.0
    %238 = vmatprep.subr.mxu0 0.0
    %239 = vmatpush1.msra.mxu0 0.0
    %240 = vmatprep.subr.mxu0 0.0
    %241 = vmatpush1.msra.mxu0 0.0
    %242 = vmatprep.subr.mxu0 0.0
    %243 = vmatpush1.msra.mxu0 0.0
    %244 = vmatprep.subr.mxu0 0.0
    %245 = vmatpush1.msra.mxu0 0.0
    %246 = vmatprep.subr.mxu0 0.0
    %247 = vmatpush1.msra.mxu0 0.0
    %248 = vmatprep.mubr.f32.mxu0 0.0
    %249 = vmatmul.mubr.f32.gmra.mrb[0].mxu0 %v182
    %v250 = vpop.f32.mrb[0].mxu0
    %v251 = vadd.f32 %v163, %v250
    %v252 = vpop.f32.mrb[0].mxu0
    %v253 = vadd.f32 %v167, %v252
    %254 = vdwg.mxu0
    %255 = vmatprep.subr.mxu0 %v145
    %256 = vmatpush1.msra.mxu0 %v144
    %257 = vmatprep.subr.mxu0 %v149
    %258 = vmatpush1.msra.mxu0 %v148
    %259 = vmatprep.subr.mxu0 %v153
    %260 = vmatpush1.msra.mxu0 %v152
    %261 = vmatprep.subr.mxu0 %v157
    %262 = vmatpush1.msra.mxu0 %v156
    %263 = vmatprep.subr.mxu0 0.0
    %264 = vmatpush1.msra.mxu0 0.0
    %265 = vmatprep.subr.mxu0 0.0
    %266 = vmatpush1.msra.mxu0 0.0
    %267 = vmatprep.subr.mxu0 0.0
    %268 = vmatpush1.msra.mxu0 0.0
    %269 = vmatprep.subr.mxu0 0.0
    %270 = vmatpush1.msra.mxu0 0.0
    %271 = vmatprep.subr.mxu0 0.0
    %272 = vmatpush1.msra.mxu0 0.0
    %273 = vmatprep.subr.mxu0 0.0
    %274 = vmatpush1.msra.mxu0 0.0
    %275 = vmatprep.subr.mxu0 0.0
    %276 = vmatpush1.msra.mxu0 0.0
    %277 = vmatprep.subr.mxu0 0.0
    %278 = vmatpush1.msra.mxu0 0.0
    %279 = vmatprep.subr.mxu0 0.0
    %280 = vmatpush1.msra.mxu0 0.0
    %281 = vmatprep.subr.mxu0 0.0
    %282 = vmatpush1.msra.mxu0 0.0
    %283 = vmatprep.subr.mxu0 0.0
    %284 = vmatpush1.msra.mxu0 0.0
    %285 = vmatprep.subr.mxu0 0.0
    %286 = vmatpush1.msra.mxu0 0.0
    %287 = vmatprep.subr.mxu0 0.0
    %288 = vmatpush1.msra.mxu0 0.0
    %289 = vmatprep.subr.mxu0 0.0
    %290 = vmatpush1.msra.mxu0 0.0
    %291 = vmatprep.subr.mxu0 0.0
    %292 = vmatpush1.msra.mxu0 0.0
    %293 = vmatprep.subr.mxu0 0.0
    %294 = vmatpush1.msra.mxu0 0.0
    %295 = vmatprep.subr.mxu0 0.0
    %296 = vmatpush1.msra.mxu0 0.0
    %297 = vmatprep.subr.mxu0 0.0
    %298 = vmatpush1.msra.mxu0 0.0
    %299 = vmatprep.subr.mxu0 0.0
    %300 = vmatpush1.msra.mxu0 0.0
    %301 = vmatprep.subr.mxu0 0.0
    %302 = vmatpush1.msra.mxu0 0.0
    %303 = vmatprep.subr.mxu0 0.0
    %304 = vmatpush1.msra.mxu0 0.0
    %305 = vmatprep.subr.mxu0 0.0
    %306 = vmatpush1.msra.mxu0 0.0
    %307 = vmatprep.subr.mxu0 0.0
    %308 = vmatpush1.msra.mxu0 0.0
    %309 = vmatprep.subr.mxu0 0.0
    %310 = vmatpush1.msra.mxu0 0.0
    %311 = vmatprep.subr.mxu0 0.0
    %312 = vmatpush1.msra.mxu0 0.0
    %313 = vmatprep.subr.mxu0 0.0
    %314 = vmatpush1.msra.mxu0 0.0
    %315 = vmatprep.subr.mxu0 0.0
    %316 = vmatpush1.msra.mxu0 0.0
    %317 = vmatprep.subr.mxu0 0.0
    %318 = vmatpush1.msra.mxu0 0.0
    %319 = vmatprep.mubr.f32.mxu0 0.0
    %320 = vmatmul.mubr.f32.gmra.mrb[0].mxu0 %v182
    %v321 = vpop.f32.mrb[0].mxu0
    %v322 = vadd.f32 %v171, %v321
    %v323 = vpop.f32.mrb[0].mxu0
    %v324 = vadd.f32 %v175, %v323
    %325 = vdwg.mxu0
    %v326 = vmax.f32 %v251, 0.0
    %v327 = vmax.f32 %v253, 0.0
    %v328 = vmax.f32 %v322, 0.0
    %v329 = vmax.f32 %v324, 0.0
    %v330 = vld [vmem:[#allocation7] sm:$0xff]
    %v331 = vld [vmem:[#allocation7 + $0x8] sm:$0xff]
    %v332 = vld [vmem:[#allocation7 + $0x10] sm:$0xff]
    %v333 = vld [vmem:[#allocation7 + $0x18] sm:$0xff]
    %v334 = vld [vmem:[#allocation7 + $0x20] sm:$0xff]
    %v335 = vld [vmem:[#allocation7 + $0x28] sm:$0xff]
    %v336 = vld [vmem:[#allocation7 + $0x30] sm:$0xff]
    %v337 = vld [vmem:[#allocation7 + $0x38] sm:$0xff]
    %v338 = vld [vmem:[#allocation7 + $0x40] sm:$0xff]
    %v339 = vld [vmem:[#allocation7 + $0x48] sm:$0xff]
    %v340 = vld [vmem:[#allocation7 + $0x50] sm:$0xff]
    %v341 = vld [vmem:[#allocation7 + $0x58] sm:$0xff]
    %v342 = vld [vmem:[#allocation7 + $0x60] sm:$0xff]
    %v343 = vld [vmem:[#allocation7 + $0x68] sm:$0xff]
    %v344 = vld [vmem:[#allocation7 + $0x70] sm:$0xff]
    %v345 = vld [vmem:[#allocation7 + $0x78] sm:$0xff]
    %v346 = vld [vmem:[#allocation7 + $0x80] sm:$0xff]
    %v347 = vld [vmem:[#allocation7 + $0x88] sm:$0xff]
    %v348 = vld [vmem:[#allocation7 + $0x90] sm:$0xff]
    %v349 = vld [vmem:[#allocation7 + $0x98] sm:$0xff]
    %v350 = vld [vmem:[#allocation7 + $0xa0] sm:$0xff]
    %v351 = vld [vmem:[#allocation7 + $0xa8] sm:$0xff]
    %v352 = vld [vmem:[#allocation7 + $0xb0] sm:$0xff]
    %v353 = vld [vmem:[#allocation7 + $0xb8] sm:$0xff]
    %v354 = vld [vmem:[#allocation7 + $0xc0] sm:$0xff]
    %v355 = vld [vmem:[#allocation7 + $0xc8] sm:$0xff]
    %v356 = vld [vmem:[#allocation7 + $0xd0] sm:$0xff]
    %v357 = vld [vmem:[#allocation7 + $0xd8] sm:$0xff]
    %v358 = vld [vmem:[#allocation7 + $0xe0] sm:$0xff]
    %v359 = vld [vmem:[#allocation7 + $0xe8] sm:$0xff]
    %v360 = vld [vmem:[#allocation7 + $0xf0] sm:$0xff]
    %v361 = vld [vmem:[#allocation7 + $0xf8] sm:$0xff]
    %v362 = vld [vmem:[#allocation7 + $0x100] sm:$0xff]
    %v363 = vld [vmem:[#allocation7 + $0x108] sm:$0xff]
    %v364 = vld [vmem:[#allocation7 + $0x110] sm:$0xff]
    %v365 = vld [vmem:[#allocation7 + $0x118] sm:$0xff]
    %v366 = vld [vmem:[#allocation7 + $0x120] sm:$0xff]
    %v367 = vld [vmem:[#allocation7 + $0x128] sm:$0xff]
    %v368 = vld [vmem:[#allocation7 + $0x130] sm:$0xff]
    %v369 = vld [vmem:[#allocation7 + $0x138] sm:$0xff]
    %v370 = vld [vmem:[#allocation7 + $0x140] sm:$0xff]
    %v371 = vld [vmem:[#allocation7 + $0x148] sm:$0xff]
    %v372 = vld [vmem:[#allocation7 + $0x150] sm:$0xff]
    %v373 = vld [vmem:[#allocation7 + $0x158] sm:$0xff]
    %v374 = vld [vmem:[#allocation7 + $0x160] sm:$0xff]
    %v375 = vld [vmem:[#allocation7 + $0x168] sm:$0xff]
    %v376 = vld [vmem:[#allocation7 + $0x170] sm:$0xff]
    %v377 = vld [vmem:[#allocation7 + $0x178] sm:$0xff]
    %v378 = vld [vmem:[#allocation7 + $0x180] sm:$0xff]
    %v379 = vld [vmem:[#allocation7 + $0x188] sm:$0xff]
    %v380 = vld [vmem:[#allocation7 + $0x190] sm:$0xff]
    %v381 = vld [vmem:[#allocation7 + $0x198] sm:$0xff]
    %v382 = vld [vmem:[#allocation7 + $0x1a0] sm:$0xff]
    %v383 = vld [vmem:[#allocation7 + $0x1a8] sm:$0xff]
    %v384 = vld [vmem:[#allocation7 + $0x1b0] sm:$0xff]
    %v385 = vld [vmem:[#allocation7 + $0x1b8] sm:$0xff]
    %v386 = vld [vmem:[#allocation7 + $0x1c0] sm:$0xff]
    %v387 = vld [vmem:[#allocation7 + $0x1c8] sm:$0xff]
    %v388 = vld [vmem:[#allocation7 + $0x1d0] sm:$0xff]
    %v389 = vld [vmem:[#allocation7 + $0x1d8] sm:$0xff]
    %v390 = vld [vmem:[#allocation7 + $0x1e0] sm:$0xff]
    %v391 = vld [vmem:[#allocation7 + $0x1e8] sm:$0xff]
    %v392 = vld [vmem:[#allocation7 + $0x1f0] sm:$0xff]
    %v393 = vld [vmem:[#allocation7 + $0x1f8] sm:$0xff]
    %v394 = vld [vmem:[#allocation7 + $0x200] sm:$0xff]
    %v395 = vld [vmem:[#allocation7 + $0x208] sm:$0xff]
    %v396 = vld [vmem:[#allocation7 + $0x210] sm:$0xff]
    %v397 = vld [vmem:[#allocation7 + $0x218] sm:$0xff]
    %v398 = vld [vmem:[#allocation7 + $0x220] sm:$0xff]
    %v399 = vld [vmem:[#allocation7 + $0x228] sm:$0xff]
    %v400 = vld [vmem:[#allocation7 + $0x230] sm:$0xff]
    %v401 = vld [vmem:[#allocation7 + $0x238] sm:$0xff]
    %v402 = vld [vmem:[#allocation7 + $0x240] sm:$0xff]
    %v403 = vld [vmem:[#allocation7 + $0x248] sm:$0xff]
    %v404 = vld [vmem:[#allocation7 + $0x250] sm:$0xff]
    %v405 = vld [vmem:[#allocation7 + $0x258] sm:$0xff]
    %v406 = vld [vmem:[#allocation7 + $0x260] sm:$0xff]
    %v407 = vld [vmem:[#allocation7 + $0x268] sm:$0xff]
    %v408 = vld [vmem:[#allocation7 + $0x270] sm:$0xff]
    %v409 = vld [vmem:[#allocation7 + $0x278] sm:$0xff]
    %v410 = vld [vmem:[#allocation7 + $0x280] sm:$0xff]
    %v411 = vld [vmem:[#allocation7 + $0x288] sm:$0xff]
    %v412 = vld [vmem:[#allocation7 + $0x290] sm:$0xff]
    %v413 = vld [vmem:[#allocation7 + $0x298] sm:$0xff]
    %v414 = vld [vmem:[#allocation7 + $0x2a0] sm:$0xff]
    %v415 = vld [vmem:[#allocation7 + $0x2a8] sm:$0xff]
    %v416 = vld [vmem:[#allocation7 + $0x2b0] sm:$0xff]
    %v417 = vld [vmem:[#allocation7 + $0x2b8] sm:$0xff]
    %v418 = vld [vmem:[#allocation7 + $0x2c0] sm:$0xff]
    %v419 = vld [vmem:[#allocation7 + $0x2c8] sm:$0xff]
    %v420 = vld [vmem:[#allocation7 + $0x2d0] sm:$0xff]
    %v421 = vld [vmem:[#allocation7 + $0x2d8] sm:$0xff]
    %v422 = vld [vmem:[#allocation7 + $0x2e0] sm:$0xff]
    %v423 = vld [vmem:[#allocation7 + $0x2e8] sm:$0xff]
    %v424 = vld [vmem:[#allocation7 + $0x2f0] sm:$0xff]
    %v425 = vld [vmem:[#allocation7 + $0x2f8] sm:$0xff]
    %v426 = vld [vmem:[#allocation7 + $0x300] sm:$0xff]
    %v427 = vld [vmem:[#allocation7 + $0x308] sm:$0xff]
    %v428 = vld [vmem:[#allocation7 + $0x310] sm:$0xff]
    %v429 = vld [vmem:[#allocation7 + $0x318] sm:$0xff]
    %v430 = vld [vmem:[#allocation7 + $0x320] sm:$0xff]
    %v431 = vld [vmem:[#allocation7 + $0x328] sm:$0xff]
    %v432 = vld [vmem:[#allocation7 + $0x330] sm:$0xff]
    %v433 = vld [vmem:[#allocation7 + $0x338] sm:$0xff]
    %v434 = vld [vmem:[#allocation7 + $0x340] sm:$0xff]
    %v435 = vld [vmem:[#allocation7 + $0x348] sm:$0xff]
    %v436 = vld [vmem:[#allocation7 + $0x350] sm:$0xff]
    %v437 = vld [vmem:[#allocation7 + $0x358] sm:$0xff]
    %v438 = vld [vmem:[#allocation7 + $0x360] sm:$0xff]
    %v439 = vld [vmem:[#allocation7 + $0x368] sm:$0xff]
    %v440 = vld [vmem:[#allocation7 + $0x370] sm:$0xff]
    %v441 = vld [vmem:[#allocation7 + $0x378] sm:$0xff]
    %v442 = vld [vmem:[#allocation7 + $0x380] sm:$0xff]
    %v443 = vld [vmem:[#allocation7 + $0x388] sm:$0xff]
    %v444 = vld [vmem:[#allocation7 + $0x390] sm:$0xff]
    %v445 = vld [vmem:[#allocation7 + $0x398] sm:$0xff]
    %v446 = vld [vmem:[#allocation7 + $0x3a0] sm:$0xff]
    %v447 = vld [vmem:[#allocation7 + $0x3a8] sm:$0xff]
    %v448 = vld [vmem:[#allocation7 + $0x3b0] sm:$0xff]
    %v449 = vld [vmem:[#allocation7 + $0x3b8] sm:$0xff]
    %v450 = vld [vmem:[#allocation7 + $0x3c0] sm:$0xff]
    %v451 = vld [vmem:[#allocation7 + $0x3c8] sm:$0xff]
    %v452 = vld [vmem:[#allocation7 + $0x3d0] sm:$0xff]
    %v453 = vld [vmem:[#allocation7 + $0x3d8] sm:$0xff]
    %v454 = vld [vmem:[#allocation7 + $0x3e0] sm:$0xff]
    %v455 = vld [vmem:[#allocation7 + $0x3e8] sm:$0xff]
    %v456 = vld [vmem:[#allocation7 + $0x3f0] sm:$0xff]
    %v457 = vld [vmem:[#allocation7 + $0x3f8] sm:$0xff]
    %v458 = vld [vmem:[#allocation8] sm:$0x3]
    %v460 = vlaneseq
    %v461 = vshrl.u32 %v460, 7
    %v462 = vsub.s32 0, %v461
    %v463 = vrot.slane %v458, %v462
    %v464 = vlaneseq
    %v465 = vshrl.u32 %v464, 7
    %v466 = vsub.s32 1, %v465
    %v467 = vrot.slane %v458, %v466
    %470 = vmatprep.subr.mxu0 %v331
    %471 = vmatpush1.msra.mxu0 %v330
    %472 = vmatprep.subr.mxu0 %v333
    %473 = vmatpush1.msra.mxu0 %v332
    %474 = vmatprep.subr.mxu0 %v335
    %475 = vmatpush1.msra.mxu0 %v334
    %476 = vmatprep.subr.mxu0 %v337
    %477 = vmatpush1.msra.mxu0 %v336
    %478 = vmatprep.subr.mxu0 %v339
    %479 = vmatpush1.msra.mxu0 %v338
    %480 = vmatprep.subr.mxu0 %v341
    %481 = vmatpush1.msra.mxu0 %v340
    %482 = vmatprep.subr.mxu0 %v343
    %483 = vmatpush1.msra.mxu0 %v342
    %484 = vmatprep.subr.mxu0 %v345
    %485 = vmatpush1.msra.mxu0 %v344
    %486 = vmatprep.subr.mxu0 %v347
    %487 = vmatpush1.msra.mxu0 %v346
    %488 = vmatprep.subr.mxu0 %v349
    %489 = vmatpush1.msra.mxu0 %v348
    %490 = vmatprep.subr.mxu0 %v351
    %491 = vmatpush1.msra.mxu0 %v350
    %492 = vmatprep.subr.mxu0 %v353
    %493 = vmatpush1.msra.mxu0 %v352
    %494 = vmatprep.subr.mxu0 %v355
    %495 = vmatpush1.msra.mxu0 %v354
    %496 = vmatprep.subr.mxu0 %v357
    %497 = vmatpush1.msra.mxu0 %v356
    %498 = vmatprep.subr.mxu0 %v359
    %499 = vmatpush1.msra.mxu0 %v358
    %500 = vmatprep.subr.mxu0 %v361
    %501 = vmatpush1.msra.mxu0 %v360
    %502 = vmatprep.subr.mxu0 %v363
    %503 = vmatpush1.msra.mxu0 %v362
    %504 = vmatprep.subr.mxu0 %v365
    %505 = vmatpush1.msra.mxu0 %v364
    %506 = vmatprep.subr.mxu0 %v367
    %507 = vmatpush1.msra.mxu0 %v366
    %508 = vmatprep.subr.mxu0 %v369
    %509 = vmatpush1.msra.mxu0 %v368
    %510 = vmatprep.subr.mxu0 %v371
    %511 = vmatpush1.msra.mxu0 %v370
    %512 = vmatprep.subr.mxu0 %v373
    %513 = vmatpush1.msra.mxu0 %v372
    %514 = vmatprep.subr.mxu0 %v375
    %515 = vmatpush1.msra.mxu0 %v374
    %516 = vmatprep.subr.mxu0 %v377
    %517 = vmatpush1.msra.mxu0 %v376
    %518 = vmatprep.subr.mxu0 %v379
    %519 = vmatpush1.msra.mxu0 %v378
    %520 = vmatprep.subr.mxu0 %v381
    %521 = vmatpush1.msra.mxu0 %v380
    %522 = vmatprep.subr.mxu0 %v383
    %523 = vmatpush1.msra.mxu0 %v382
    %524 = vmatprep.subr.mxu0 %v385
    %525 = vmatpush1.msra.mxu0 %v384
    %526 = vmatprep.subr.mxu0 %v387
    %527 = vmatpush1.msra.mxu0 %v386
    %528 = vmatprep.subr.mxu0 %v389
    %529 = vmatpush1.msra.mxu0 %v388
    %530 = vmatprep.subr.mxu0 %v391
    %531 = vmatpush1.msra.mxu0 %v390
    %532 = vmatprep.subr.mxu0 %v393
    %533 = vmatpush1.msra.mxu0 %v392
    %534 = vmatprep.mubr.f32.mxu0 %v327
    %535 = vmatmul.mubr.f32.gmra.mrb[0].mxu0 %v326
    %v536 = vpop.f32.mrb[0].mxu0
    %v537 = vadd.f32 %v463, %v536
    %v538 = vpop.f32.mrb[0].mxu0
    %v539 = vadd.f32 %v467, %v538
    %540 = vdwg.mxu0
    %541 = vmatprep.subr.mxu0 %v395
    %542 = vmatpush1.msra.mxu0 %v394
    %543 = vmatprep.subr.mxu0 %v397
    %544 = vmatpush1.msra.mxu0 %v396
    %545 = vmatprep.subr.mxu0 %v399
    %546 = vmatpush1.msra.mxu0 %v398
    %547 = vmatprep.subr.mxu0 %v401
    %548 = vmatpush1.msra.mxu0 %v400
    %549 = vmatprep.subr.mxu0 %v403
    %550 = vmatpush1.msra.mxu0 %v402
    %551 = vmatprep.subr.mxu0 %v405
    %552 = vmatpush1.msra.mxu0 %v404
    %553 = vmatprep.subr.mxu0 %v407
    %554 = vmatpush1.msra.mxu0 %v406
    %555 = vmatprep.subr.mxu0 %v409
    %556 = vmatpush1.msra.mxu0 %v408
    %557 = vmatprep.subr.mxu0 %v411
    %558 = vmatpush1.msra.mxu0 %v410
    %559 = vmatprep.subr.mxu0 %v413
    %560 = vmatpush1.msra.mxu0 %v412
    %561 = vmatprep.subr.mxu0 %v415
    %562 = vmatpush1.msra.mxu0 %v414
    %563 = vmatprep.subr.mxu0 %v417
    %564 = vmatpush1.msra.mxu0 %v416
    %565 = vmatprep.subr.mxu0 %v419
    %566 = vmatpush1.msra.mxu0 %v418
    %567 = vmatprep.subr.mxu0 %v421
    %568 = vmatpush1.msra.mxu0 %v420
    %569 = vmatprep.subr.mxu0 %v423
    %570 = vmatpush1.msra.mxu0 %v422
    %571 = vmatprep.subr.mxu0 %v425
    %572 = vmatpush1.msra.mxu0 %v424
    %573 = vmatprep.subr.mxu0 %v427
    %574 = vmatpush1.msra.mxu0 %v426
    %575 = vmatprep.subr.mxu0 %v429
    %576 = vmatpush1.msra.mxu0 %v428
    %577 = vmatprep.subr.mxu0 %v431
    %578 = vmatpush1.msra.mxu0 %v430
    %579 = vmatprep.subr.mxu0 %v433
    %580 = vmatpush1.msra.mxu0 %v432
    %581 = vmatprep.subr.mxu0 %v435
    %582 = vmatpush1.msra.mxu0 %v434
    %583 = vmatprep.subr.mxu0 %v437
    %584 = vmatpush1.msra.mxu0 %v436
    %585 = vmatprep.subr.mxu0 %v439
    %586 = vmatpush1.msra.mxu0 %v438
    %587 = vmatprep.subr.mxu0 %v441
    %588 = vmatpush1.msra.mxu0 %v440
    %589 = vmatprep.subr.mxu0 %v443
    %590 = vmatpush1.msra.mxu0 %v442
    %591 = vmatprep.subr.mxu0 %v445
    %592 = vmatpush1.msra.mxu0 %v444
    %593 = vmatprep.subr.mxu0 %v447
    %594 = vmatpush1.msra.mxu0 %v446
    %595 = vmatprep.subr.mxu0 %v449
    %596 = vmatpush1.msra.mxu0 %v448
    %597 = vmatprep.subr.mxu0 %v451
    %598 = vmatpush1.msra.mxu0 %v450
    %599 = vmatprep.subr.mxu0 %v453
    %600 = vmatpush1.msra.mxu0 %v452
    %601 = vmatprep.subr.mxu0 %v455
    %602 = vmatpush1.msra.mxu0 %v454
    %603 = vmatprep.subr.mxu0 %v457
    %604 = vmatpush1.msra.mxu0 %v456
    %605 = vmatprep.mubr.f32.mxu0 %v329
    %606 = vmatmul.mubr.f32.gmra.mrb[0].mxu0 %v328
    %v607 = vpop.f32.mrb[0].mxu0
    %v608 = vadd.f32 %v537, %v607
    %v609 = vpop.f32.mrb[0].mxu0
    %v610 = vadd.f32 %v539, %v609
    %611 = vdwg.mxu0
    %v612 = vmax.f32 %v608, 0.0
    %v613 = vmax.f32 %v610, 0.0
    %v614 = vld [vmem:[#allocation10] sm:$0xff]
    %v615 = vld [vmem:[#allocation10 + $0x8] sm:$0xff]
    %v616 = vld [vmem:[#allocation10 + $0x10] sm:$0xff]
    %v617 = vld [vmem:[#allocation10 + $0x18] sm:$0xff]
    %v618 = vld [vmem:[#allocation10 + $0x20] sm:$0xff]
    %v619 = vld [vmem:[#allocation10 + $0x28] sm:$0xff]
    %v620 = vld [vmem:[#allocation10 + $0x30] sm:$0xff]
    %v621 = vld [vmem:[#allocation10 + $0x38] sm:$0xff]
    %v622 = vld [vmem:[#allocation10 + $0x40] sm:$0xff]
    %v623 = vld [vmem:[#allocation10 + $0x48] sm:$0xff]
    %v624 = vld [vmem:[#allocation10 + $0x50] sm:$0xff]
    %v625 = vld [vmem:[#allocation10 + $0x58] sm:$0xff]
    %v626 = vld [vmem:[#allocation10 + $0x60] sm:$0xff]
    %v627 = vld [vmem:[#allocation10 + $0x68] sm:$0xff]
    %v628 = vld [vmem:[#allocation10 + $0x70] sm:$0xff]
    %v629 = vld [vmem:[#allocation10 + $0x78] sm:$0xff]
    %v630 = vld [vmem:[#allocation10 + $0x80] sm:$0xff]
    %v631 = vld [vmem:[#allocation10 + $0x88] sm:$0xff]
    %v632 = vld [vmem:[#allocation10 + $0x90] sm:$0xff]
    %v633 = vld [vmem:[#allocation10 + $0x98] sm:$0xff]
    %v634 = vld [vmem:[#allocation10 + $0xa0] sm:$0xff]
    %v635 = vld [vmem:[#allocation10 + $0xa8] sm:$0xff]
    %v636 = vld [vmem:[#allocation10 + $0xb0] sm:$0xff]
    %v637 = vld [vmem:[#allocation10 + $0xb8] sm:$0xff]
    %v638 = vld [vmem:[#allocation10 + $0xc0] sm:$0xff]
    %v639 = vld [vmem:[#allocation10 + $0xc8] sm:$0xff]
    %v640 = vld [vmem:[#allocation10 + $0xd0] sm:$0xff]
    %v641 = vld [vmem:[#allocation10 + $0xd8] sm:$0xff]
    %v642 = vld [vmem:[#allocation10 + $0xe0] sm:$0xff]
    %v643 = vld [vmem:[#allocation10 + $0xe8] sm:$0xff]
    %v644 = vld [vmem:[#allocation10 + $0xf0] sm:$0xff]
    %v645 = vld [vmem:[#allocation10 + $0xf8] sm:$0xff]
    %v646 = vld [vmem:[#allocation10 + $0x100] sm:$0xff]
    %v647 = vld [vmem:[#allocation10 + $0x108] sm:$0xff]
    %v648 = vld [vmem:[#allocation10 + $0x110] sm:$0xff]
    %v649 = vld [vmem:[#allocation10 + $0x118] sm:$0xff]
    %v650 = vld [vmem:[#allocation10 + $0x120] sm:$0xff]
    %v651 = vld [vmem:[#allocation10 + $0x128] sm:$0xff]
    %v652 = vld [vmem:[#allocation10 + $0x130] sm:$0xff]
    %v653 = vld [vmem:[#allocation10 + $0x138] sm:$0xff]
    %v654 = vld [vmem:[#allocation10 + $0x140] sm:$0xff]
    %v655 = vld [vmem:[#allocation10 + $0x148] sm:$0xff]
    %v656 = vld [vmem:[#allocation10 + $0x150] sm:$0xff]
    %v657 = vld [vmem:[#allocation10 + $0x158] sm:$0xff]
    %v658 = vld [vmem:[#allocation10 + $0x160] sm:$0xff]
    %v659 = vld [vmem:[#allocation10 + $0x168] sm:$0xff]
    %v660 = vld [vmem:[#allocation10 + $0x170] sm:$0xff]
    %v661 = vld [vmem:[#allocation10 + $0x178] sm:$0xff]
    %v662 = vld [vmem:[#allocation10 + $0x180] sm:$0xff]
    %v663 = vld [vmem:[#allocation10 + $0x188] sm:$0xff]
    %v664 = vld [vmem:[#allocation10 + $0x190] sm:$0xff]
    %v665 = vld [vmem:[#allocation10 + $0x198] sm:$0xff]
    %v666 = vld [vmem:[#allocation10 + $0x1a0] sm:$0xff]
    %v667 = vld [vmem:[#allocation10 + $0x1a8] sm:$0xff]
    %v668 = vld [vmem:[#allocation10 + $0x1b0] sm:$0xff]
    %v669 = vld [vmem:[#allocation10 + $0x1b8] sm:$0xff]
    %v670 = vld [vmem:[#allocation10 + $0x1c0] sm:$0xff]
    %v671 = vld [vmem:[#allocation10 + $0x1c8] sm:$0xff]
    %v672 = vld [vmem:[#allocation10 + $0x1d0] sm:$0xff]
    %v673 = vld [vmem:[#allocation10 + $0x1d8] sm:$0xff]
    %v674 = vld [vmem:[#allocation10 + $0x1e0] sm:$0xff]
    %v675 = vld [vmem:[#allocation10 + $0x1e8] sm:$0xff]
    %v676 = vld [vmem:[#allocation10 + $0x1f0] sm:$0xff]
    %v677 = vld [vmem:[#allocation10 + $0x1f8] sm:$0xff]
    %v678 = vld [vmem:[#allocation11] sm:$0x3]
    %v680 = vlaneseq
    %v681 = vshrl.u32 %v680, 7
    %v682 = vsub.s32 0, %v681
    %v683 = vrot.slane %v678, %v682
    %v684 = vlaneseq
    %v685 = vshrl.u32 %v684, 7
    %v686 = vsub.s32 1, %v685
    %v687 = vrot.slane %v678, %v686
    %690 = vmatprep.subr.mxu0 %v615
    %691 = vmatpush1.msra.mxu0 %v614
    %692 = vmatprep.subr.mxu0 %v617
    %693 = vmatpush1.msra.mxu0 %v616
    %694 = vmatprep.subr.mxu0 %v619
    %695 = vmatpush1.msra.mxu0 %v618
    %696 = vmatprep.subr.mxu0 %v621
    %697 = vmatpush1.msra.mxu0 %v620
    %698 = vmatprep.subr.mxu0 %v623
    %699 = vmatpush1.msra.mxu0 %v622
    %700 = vmatprep.subr.mxu0 %v625
    %701 = vmatpush1.msra.mxu0 %v624
    %702 = vmatprep.subr.mxu0 %v627
    %703 = vmatpush1.msra.mxu0 %v626
    %704 = vmatprep.subr.mxu0 %v629
    %705 = vmatpush1.msra.mxu0 %v628
    %706 = vmatprep.subr.mxu0 %v631
    %707 = vmatpush1.msra.mxu0 %v630
    %708 = vmatprep.subr.mxu0 %v633
    %709 = vmatpush1.msra.mxu0 %v632
    %710 = vmatprep.subr.mxu0 %v635
    %711 = vmatpush1.msra.mxu0 %v634
    %712 = vmatprep.subr.mxu0 %v637
    %713 = vmatpush1.msra.mxu0 %v636
    %714 = vmatprep.subr.mxu0 %v639
    %715 = vmatpush1.msra.mxu0 %v638
    %716 = vmatprep.subr.mxu0 %v641
    %717 = vmatpush1.msra.mxu0 %v640
    %718 = vmatprep.subr.mxu0 %v643
    %719 = vmatpush1.msra.mxu0 %v642
    %720 = vmatprep.subr.mxu0 %v645
    %721 = vmatpush1.msra.mxu0 %v644
    %722 = vmatprep.subr.mxu0 %v647
    %723 = vmatpush1.msra.mxu0 %v646
    %724 = vmatprep.subr.mxu0 %v649
    %725 = vmatpush1.msra.mxu0 %v648
    %726 = vmatprep.subr.mxu0 %v651
    %727 = vmatpush1.msra.mxu0 %v650
    %728 = vmatprep.subr.mxu0 %v653
    %729 = vmatpush1.msra.mxu0 %v652
    %730 = vmatprep.subr.mxu0 %v655
    %731 = vmatpush1.msra.mxu0 %v654
    %732 = vmatprep.subr.mxu0 %v657
    %733 = vmatpush1.msra.mxu0 %v656
    %734 = vmatprep.subr.mxu0 %v659
    %735 = vmatpush1.msra.mxu0 %v658
    %736 = vmatprep.subr.mxu0 %v661
    %737 = vmatpush1.msra.mxu0 %v660
    %738 = vmatprep.subr.mxu0 %v663
    %739 = vmatpush1.msra.mxu0 %v662
    %740 = vmatprep.subr.mxu0 %v665
    %741 = vmatpush1.msra.mxu0 %v664
    %742 = vmatprep.subr.mxu0 %v667
    %743 = vmatpush1.msra.mxu0 %v666
    %744 = vmatprep.subr.mxu0 %v669
    %745 = vmatpush1.msra.mxu0 %v668
    %746 = vmatprep.subr.mxu0 %v671
    %747 = vmatpush1.msra.mxu0 %v670
    %748 = vmatprep.subr.mxu0 %v673
    %749 = vmatpush1.msra.mxu0 %v672
    %750 = vmatprep.subr.mxu0 %v675
    %751 = vmatpush1.msra.mxu0 %v674
    %752 = vmatprep.subr.mxu0 %v677
    %753 = vmatpush1.msra.mxu0 %v676
    %754 = vmatprep.mubr.f32.mxu0 %v613
    %755 = vmatmul.mubr.f32.gmra.mrb[0].mxu0 %v612
    %v756 = vpop.f32.mrb[0].mxu0
    %v757 = vadd.f32 %v683, %v756
    %v758 = vpop.f32.mrb[0].mxu0
    %v759 = vadd.f32 %v687, %v758
    %760 = vdwg.mxu0
    %v761 = vmax.f32 %v757, 0.0
    %v762 = vmax.f32 %v759, 0.0
    %v763 = vld [vmem:[%s13] sm:$0xff]
    %v764 = vld [vmem:[%s13 + $0x8] sm:$0xff]
    %v765 = vmul.f32 %v761, %v763
    %v766 = vmul.f32 %v762, %v764
    %v767 = vld [vmem:[%s7] sm:$0xff]
    %v768 = vld [vmem:[%s7 + $0x8] sm:$0xff]
    %v769 = vld [vmem:[%s7 + $0x10] sm:$0xff]
    %v770 = vld [vmem:[%s7 + $0x18] sm:$0xff]
    %v771 = vld [vmem:[%s7 + $0x20] sm:$0xff]
    %v772 = vld [vmem:[%s7 + $0x28] sm:$0xff]
    %v773 = vld [vmem:[%s7 + $0x30] sm:$0xff]
    %v774 = vld [vmem:[%s7 + $0x38] sm:$0xff]
    %v775 = vld [vmem:[%s7 + $0x40] sm:$0xff]
    %v776 = vld [vmem:[%s7 + $0x48] sm:$0xff]
    %v777 = vld [vmem:[%s7 + $0x50] sm:$0xff]
    %v778 = vld [vmem:[%s7 + $0x58] sm:$0xff]
    %v779 = vld [vmem:[%s7 + $0x60] sm:$0xff]
    %v780 = vld [vmem:[%s7 + $0x68] sm:$0xff]
    %v781 = vld [vmem:[%s7 + $0x70] sm:$0xff]
    %v782 = vld [vmem:[%s7 + $0x78] sm:$0xff]
    %v783 = vld [vmem:[%s7 + $0x80] sm:$0xff]
    %v784 = vld [vmem:[%s7 + $0x88] sm:$0xff]
    %v785 = vld [vmem:[%s7 + $0x90] sm:$0xff]
    %v786 = vld [vmem:[%s7 + $0x98] sm:$0xff]
    %v787 = vld [vmem:[%s7 + $0xa0] sm:$0xff]
    %v788 = vld [vmem:[%s7 + $0xa8] sm:$0xff]
    %v789 = vld [vmem:[%s7 + $0xb0] sm:$0xff]
    %v790 = vld [vmem:[%s7 + $0xb8] sm:$0xff]
    %v791 = vld [vmem:[%s7 + $0xc0] sm:$0xff]
    %v792 = vld [vmem:[%s7 + $0xc8] sm:$0xff]
    %v793 = vld [vmem:[%s7 + $0xd0] sm:$0xff]
    %v794 = vld [vmem:[%s7 + $0xd8] sm:$0xff]
    %v795 = vld [vmem:[%s7 + $0xe0] sm:$0xff]
    %v796 = vld [vmem:[%s7 + $0xe8] sm:$0xff]
    %v797 = vld [vmem:[%s7 + $0xf0] sm:$0xff]
    %v798 = vld [vmem:[%s7 + $0xf8] sm:$0xff]
    %v799 = vld [vmem:[%s8] sm:$0x1]
    %v801 = vlaneseq
    %v802 = vshrl.u32 %v801, 7
    %v803 = vsub.s32 0, %v802
    %v804 = vrot.slane %v799, %v803
    %806 = vmatprep.subr.mxu0 0.0
    %807 = vmatpush1.msra.mxu0 %v767
    %808 = vmatprep.subr.mxu0 0.0
    %809 = vmatpush1.msra.mxu0 %v768
    %810 = vmatprep.subr.mxu0 0.0
    %811 = vmatpush1.msra.mxu0 %v769
    %812 = vmatprep.subr.mxu0 0.0
    %813 = vmatpush1.msra.mxu0 %v770
    %814 = vmatprep.subr.mxu0 0.0
    %815 = vmatpush1.msra.mxu0 %v771
    %816 = vmatprep.subr.mxu0 0.0
    %817 = vmatpush1.msra.mxu0 %v772
    %818 = vmatprep.subr.mxu0 0.0
    %819 = vmatpush1.msra.mxu0 %v773
    %820 = vmatprep.subr.mxu0 0.0
    %821 = vmatpush1.msra.mxu0 %v774
    %822 = vmatprep.subr.mxu0 0.0
    %823 = vmatpush1.msra.mxu0 %v775
    %824 = vmatprep.subr.mxu0 0.0
    %825 = vmatpush1.msra.mxu0 %v776
    %826 = vmatprep.subr.mxu0 0.0
    %827 = vmatpush1.msra.mxu0 %v777
    %828 = vmatprep.subr.mxu0 0.0
    %829 = vmatpush1.msra.mxu0 %v778
    %830 = vmatprep.subr.mxu0 0.0
    %831 = vmatpush1.msra.mxu0 %v779
    %832 = vmatprep.subr.mxu0 0.0
    %833 = vmatpush1.msra.mxu0 %v780
    %834 = vmatprep.subr.mxu0 0.0
    %835 = vmatpush1.msra.mxu0 %v781
    %836 = vmatprep.subr.mxu0 0.0
    %837 = vmatpush1.msra.mxu0 %v782
    %838 = vmatprep.subr.mxu0 0.0
    %839 = vmatpush1.msra.mxu0 %v783
    %840 = vmatprep.subr.mxu0 0.0
    %841 = vmatpush1.msra.mxu0 %v784
    %842 = vmatprep.subr.mxu0 0.0
    %843 = vmatpush1.msra.mxu0 %v785
    %844 = vmatprep.subr.mxu0 0.0
    %845 = vmatpush1.msra.mxu0 %v786
    %846 = vmatprep.subr.mxu0 0.0
    %847 = vmatpush1.msra.mxu0 %v787
    %848 = vmatprep.subr.mxu0 0.0
    %849 = vmatpush1.msra.mxu0 %v788
    %850 = vmatprep.subr.mxu0 0.0
    %851 = vmatpush1.msra.mxu0 %v789
    %852 = vmatprep.subr.mxu0 0.0
    %853 = vmatpush1.msra.mxu0 %v790
    %854 = vmatprep.subr.mxu0 0.0
    %855 = vmatpush1.msra.mxu0 %v791
    %856 = vmatprep.subr.mxu0 0.0
    %857 = vmatpush1.msra.mxu0 %v792
    %858 = vmatprep.subr.mxu0 0.0
    %859 = vmatpush1.msra.mxu0 %v793
    %860 = vmatprep.subr.mxu0 0.0
    %861 = vmatpush1.msra.mxu0 %v794
    %862 = vmatprep.subr.mxu0 0.0
    %863 = vmatpush1.msra.mxu0 %v795
    %864 = vmatprep.subr.mxu0 0.0
    %865 = vmatpush1.msra.mxu0 %v796
    %866 = vmatprep.subr.mxu0 0.0
    %867 = vmatpush1.msra.mxu0 %v797
    %868 = vmatprep.subr.mxu0 0.0
    %869 = vmatpush1.msra.mxu0 %v798
    %870 = vmatprep.mubr.f32.mxu0 %v766
    %871 = vmatmul.mubr.f32.gmra.mrb[0].mxu0 %v765
    %v872 = vpop.f32.mrb[0].mxu0
    %v873 = vadd.f32 %v804, %v872
    %v874 = vpop.f32.mrb[0].mxu0
    %875 = vdwg.mxu0
    %v876 = vmax.f32 %v873, 0.0
    %v877 = vld [vmem:[%s14] sm:$0xff]
    %v878 = vmul.f32 %v876, %v877
    %v879 = vld [vmem:[%s9] sm:$0xff]
    %v880 = vld [vmem:[%s9 + $0x8] sm:$0xff]
    %v881 = vld [vmem:[%s9 + $0x10] sm:$0xff]
    %v882 = vld [vmem:[%s9 + $0x18] sm:$0xff]
    %v883 = vld [vmem:[%s9 + $0x20] sm:$0xff]
    %v884 = vld [vmem:[%s9 + $0x28] sm:$0xff]
    %v885 = vld [vmem:[%s9 + $0x30] sm:$0xff]
    %v886 = vld [vmem:[%s9 + $0x38] sm:$0xff]
    %v887 = vld [vmem:[%s9 + $0x40] sm:$0xff]
    %v888 = vld [vmem:[%s9 + $0x48] sm:$0xff]
    %v889 = vld [vmem:[%s9 + $0x50] sm:$0xff]
    %v890 = vld [vmem:[%s9 + $0x58] sm:$0xff]
    %v891 = vld [vmem:[%s9 + $0x60] sm:$0xff]
    %v892 = vld [vmem:[%s9 + $0x68] sm:$0xff]
    %v893 = vld [vmem:[%s9 + $0x70] sm:$0xff]
    %v894 = vld [vmem:[%s9 + $0x78] sm:$0xff]
    %v895 = vld [vmem:[#allocation13] sm:$0x1]
    %v897 = vlaneseq
    %v898 = vshrl.u32 %v897, 7
    %v899 = vsub.s32 0, %v898
    %v900 = vrot.slane %v895, %v899
    %902 = vmatprep.subr.mxu0 0.0
    %903 = vmatpush1.msra.mxu0 %v879
    %904 = vmatprep.subr.mxu0 0.0
    %905 = vmatpush1.msra.mxu0 %v880
    %906 = vmatprep.subr.mxu0 0.0
    %907 = vmatpush1.msra.mxu0 %v881
    %908 = vmatprep.subr.mxu0 0.0
    %909 = vmatpush1.msra.mxu0 %v882
    %910 = vmatprep.subr.mxu0 0.0
    %911 = vmatpush1.msra.mxu0 %v883
    %912 = vmatprep.subr.mxu0 0.0
    %913 = vmatpush1.msra.mxu0 %v884
    %914 = vmatprep.subr.mxu0 0.0
    %915 = vmatpush1.msra.mxu0 %v885
    %916 = vmatprep.subr.mxu0 0.0
    %917 = vmatpush1.msra.mxu0 %v886
    %918 = vmatprep.subr.mxu0 0.0
    %919 = vmatpush1.msra.mxu0 %v887
    %920 = vmatprep.subr.mxu0 0.0
    %921 = vmatpush1.msra.mxu0 %v888
    %922 = vmatprep.subr.mxu0 0.0
    %923 = vmatpush1.msra.mxu0 %v889
    %924 = vmatprep.subr.mxu0 0.0
    %925 = vmatpush1.msra.mxu0 %v890
    %926 = vmatprep.subr.mxu0 0.0
    %927 = vmatpush1.msra.mxu0 %v891
    %928 = vmatprep.subr.mxu0 0.0
    %929 = vmatpush1.msra.mxu0 %v892
    %930 = vmatprep.subr.mxu0 0.0
    %931 = vmatpush1.msra.mxu0 %v893
    %932 = vmatprep.subr.mxu0 0.0
    %933 = vmatpush1.msra.mxu0 %v894
    %934 = vmatprep.subr.mxu0 0.0
    %935 = vmatpush1.msra.mxu0 0.0
    %936 = vmatprep.subr.mxu0 0.0
    %937 = vmatpush1.msra.mxu0 0.0
    %938 = vmatprep.subr.mxu0 0.0
    %939 = vmatpush1.msra.mxu0 0.0
    %940 = vmatprep.subr.mxu0 0.0
    %941 = vmatpush1.msra.mxu0 0.0
    %942 = vmatprep.subr.mxu0 0.0
    %943 = vmatpush1.msra.mxu0 0.0
    %944 = vmatprep.subr.mxu0 0.0
    %945 = vmatpush1.msra.mxu0 0.0
    %946 = vmatprep.subr.mxu0 0.0
    %947 = vmatpush1.msra.mxu0 0.0
    %948 = vmatprep.subr.mxu0 0.0
    %949 = vmatpush1.msra.mxu0 0.0
    %950 = vmatprep.subr.mxu0 0.0
    %951 = vmatpush1.msra.mxu0 0.0
    %952 = vmatprep.subr.mxu0 0.0
    %953 = vmatpush1.msra.mxu0 0.0
    %954 = vmatprep.subr.mxu0 0.0
    %955 = vmatpush1.msra.mxu0 0.0
    %956 = vmatprep.subr.mxu0 0.0
    %957 = vmatpush1.msra.mxu0 0.0
    %958 = vmatprep.subr.mxu0 0.0
    %959 = vmatpush1.msra.mxu0 0.0
    %960 = vmatprep.subr.mxu0 0.0
    %961 = vmatpush1.msra.mxu0 0.0
    %962 = vmatprep.subr.mxu0 0.0
    %963 = vmatpush1.msra.mxu0 0.0
    %964 = vmatprep.subr.mxu0 0.0
    %965 = vmatpush1.msra.mxu0 0.0
    %966 = vmatprep.mubr.f32.mxu0 0.0
    %967 = vmatmul.mubr.f32.gmra.mrb[0].mxu0 %v878
    %v968 = vpop.f32.mrb[0].mxu0
    %v969 = vadd.f32 %v900, %v968
    %v970 = vpop.f32.mrb[0].mxu0
    %971 = vdwg.mxu0
    %v972 = vmax.f32 %v969, 0.0
    %v973 = vld [vmem:[%s15] sm:$0xff]
    %v974 = vmul.f32 %v972, %v973
    %v975 = vld [vmem:[%s11] sm:$0xff]
    %v976 = vld [vmem:[%s11 + $0x8] sm:$0xff]
    %v977 = vld [vmem:[%s11 + $0x10] sm:$0xff]
    %v978 = vld [vmem:[%s11 + $0x18] sm:$0xff]
    %v979 = vld [vmem:[%s11 + $0x20] sm:$0xff]
    %v980 = vld [vmem:[%s11 + $0x28] sm:$0xff]
    %v981 = vld [vmem:[%s11 + $0x30] sm:$0xff]
    %v982 = vld [vmem:[%s11 + $0x38] sm:$0xff]
    %v983 = vld [vmem:[%s12] sm:$0x1]
    %v985 = vlaneseq
    %v986 = vshrl.u32 %v985, 7
    %v987 = vsub.s32 0, %v986
    %v988 = vrot.slane %v983, %v987
    %vm990 = vcmask 523264
    %v992 = vsel %vm990, %v974, 0
    %994 = vmatprep.subr.mxu0 0.0
    %995 = vmatpush1.msra.mxu0 %v975
    %996 = vmatprep.subr.mxu0 0.0
    %997 = vmatpush1.msra.mxu0 %v976
    %998 = vmatprep.subr.mxu0 0.0
    %999 = vmatpush1.msra.mxu0 %v977
    %1000 = vmatprep.subr.mxu0 0.0
    %1001 = vmatpush1.msra.mxu0 %v978
    %1002 = vmatprep.subr.mxu0 0.0
    %1003 = vmatpush1.msra.mxu0 %v979
    %1004 = vmatprep.subr.mxu0 0.0
    %1005 = vmatpush1.msra.mxu0 %v980
    %1006 = vmatprep.subr.mxu0 0.0
    %1007 = vmatpush1.msra.mxu0 %v981
    %1008 = vmatprep.subr.mxu0 0.0
    %1009 = vmatpush1.msra.mxu0 %v982
    %1010 = vmatprep.subr.mxu0 0.0
    %1011 = vmatpush1.msra.mxu0 0.0
    %1012 = vmatprep.subr.mxu0 0.0
    %1013 = vmatpush1.msra.mxu0 0.0
    %1014 = vmatprep.subr.mxu0 0.0
    %1015 = vmatpush1.msra.mxu0 0.0
    %1016 = vmatprep.subr.mxu0 0.0
    %1017 = vmatpush1.msra.mxu0 0.0
    %1018 = vmatprep.subr.mxu0 0.0
    %1019 = vmatpush1.msra.mxu0 0.0
    %1020 = vmatprep.subr.mxu0 0.0
    %1021 = vmatpush1.msra.mxu0 0.0
    %1022 = vmatprep.subr.mxu0 0.0
    %1023 = vmatpush1.msra.mxu0 0.0
    %1024 = vmatprep.subr.mxu0 0.0
    %1025 = vmatpush1.msra.mxu0 0.0
    %1026 = vmatprep.subr.mxu0 0.0
    %1027 = vmatpush1.msra.mxu0 0.0
    %1028 = vmatprep.subr.mxu0 0.0
    %1029 = vmatpush1.msra.mxu0 0.0
    %1030 = vmatprep.subr.mxu0 0.0
    %1031 = vmatpush1.msra.mxu0 0.0
    %1032 = vmatprep.subr.mxu0 0.0
    %1033 = vmatpush1.msra.mxu0 0.0
    %1034 = vmatprep.subr.mxu0 0.0
    %1035 = vmatpush1.msra.mxu0 0.0
    %1036 = vmatprep.subr.mxu0 0.0
    %1037 = vmatpush1.msra.mxu0 0.0
    %1038 = vmatprep.subr.mxu0 0.0
    %1039 = vmatpush1.msra.mxu0 0.0
    %1040 = vmatprep.subr.mxu0 0.0
    %1041 = vmatpush1.msra.mxu0 0.0
    %1042 = vmatprep.subr.mxu0 0.0
    %1043 = vmatpush1.msra.mxu0 0.0
    %1044 = vmatprep.subr.mxu0 0.0
    %1045 = vmatpush1.msra.mxu0 0.0
    %1046 = vmatprep.subr.mxu0 0.0
    %1047 = vmatpush1.msra.mxu0 0.0
    %1048 = vmatprep.subr.mxu0 0.0
    %1049 = vmatpush1.msra.mxu0 0.0
    %1050 = vmatprep.subr.mxu0 0.0
    %1051 = vmatpush1.msra.mxu0 0.0
    %1052 = vmatprep.subr.mxu0 0.0
    %1053 = vmatpush1.msra.mxu0 0.0
    %1054 = vmatprep.subr.mxu0 0.0
    %1055 = vmatpush1.msra.mxu0 0.0
    %1056 = vmatprep.subr.mxu0 0.0
    %1057 = vmatpush1.msra.mxu0 0.0
    %1058 = vmatprep.mubr.f32.mxu0 0.0
    %1059 = vmatmul.mubr.f32.gmra.mrb[0].mxu0 %v992
    %v1060 = vpop.f32.mrb[0].mxu0
    %v1061 = vadd.f32 %v988, %v1060
    %v1062 = vpop.f32.mrb[0].mxu0
    %1063 = vdwg.mxu0
    %vm1064 = vcmask 113664
    %v1065 = vsel %vm1064, %v1061, -inf
    %1066 = vmax.xlane.f32.xlu0 %v1065
    %v1067 = vpop.xlane.xlu0 %1066
    %v1068 = vsub.f32 %v1061, %v1067
    %v1069 = vmul.f32 %v1068, 1.442695
    %v1070 = vpow.pop %v1069
    %v1071 = vsel %vm1064, %v1070, 0.0
    %1072 = vadd.xlane.f32.xlu0 %v1071
    %v1073 = vpop.xlane.xlu0 %1072
    %v1074 = vlog2.pop %v1073
    %v1075 = vmul.f32 %v1074, 0.6931472
    %v1076 = vsub.f32 %v1068, %v1075
    %1077 = vst.msk [vmem:[#allocation14] sm:$0xff] %vm1064, %v1076
    // Predicated region
    $region94: #{tpu_custom_call.1} parent=1 // pred_check
      _
    $region95: #{tpu_custom_call.1} parent=1 // pred_check_branch
      %1079 = sbr.rel (0) target = $region97
    $region96: #{tpu_custom_call.1} parent=1 // pred_region
      %s1081 = ssub.s32 128, 128
      %1082 = vsyncadd [#allocation4], %s1081
      %s1084 = sshll.u32 [#allocation14], 4
      %s1085 = int_to_ptr.vmem [resolvable:$true] %s1084
      %1087 = dma.vmem_to_hbm [thread:$0]  %s1085, 128, %s16, [#allocation4]
    $region97: #{tpu_custom_call.1} parent=1 // pred_fallthru
      _
    // Predicated region
    $region98: #{tpu_custom_call.1} parent=1 // pred_check
      _
    $region99: #{tpu_custom_call.1} parent=1 // pred_check_branch
      %1089 = sbr.rel (0) target = $region101
    $region100: #{tpu_custom_call.1} parent=1 // pred_region
      %1090 = dma.done [#allocation4], 128
    $region101: #{tpu_custom_call.1} parent=1 // pred_fallthru
      _
    %1091 = vsyncpa [#allocation3], 1
    %1092 = vsyncpa [#allocation6], 1
    %1093 = vsyncpa [#allocation9], 1
    %1094 = vsyncpa [#allocation12], 1
    %1095 = vsyncpa [#allocation4], 1

</llo_original>
